<compile_context>
chip_gen: v7x
topology: tpu7x:2x2x1
jax: 0.10.0
libtpu: 0.0.40
codegen_flags: <defaults>
</compile_context>

<pallas_src>
import jax
import jax.numpy as jnp
from jax import lax
from jax.experimental import pallas as pl
from jax.experimental.pallas import tpu as pltpu


def _round_up(x, m):
    return (x + m - 1) // m * m


# --------------------------------------------------------------------------
# Fast path: VMEM-resident transposed tables + one-hot MXU gather (small V).
# --------------------------------------------------------------------------
def pack_tables_resident(embeddings, biases):
    """Pack (d_pad, V_pad) transposed tables.

    table_i_T rows: [emb.T ; bias ; 1 ; 0...]   (i side)
    table_j_T rows: [emb.T ; 1 ; bias ; 0...]   (j side)
    so that sum_d (table_i_T[:, xi] * table_j_T[:, xj]) = dot + bias_i + bias_j.
    """
    V, D = embeddings.shape
    d_pad = _round_up(D + 2, 8)
    v_pad = _round_up(V, 128)
    base = jnp.zeros((d_pad, v_pad), jnp.float32)
    base = base.at[:D, :V].set(embeddings.astype(jnp.float32).T)
    b = biases.astype(jnp.float32).reshape(V)
    ones = jnp.ones((V,), jnp.float32)
    table_i_t = base.at[D, :V].set(b).at[D + 1, :V].set(ones)
    table_j_t = base.at[D, :V].set(ones).at[D + 1, :V].set(b)
    return table_i_t, table_j_t


def _resident_kernel(idx_ref, ti_ref, tj_ref, out_ref):
    """idx_ref: (2, tile_b) i32 VMEM; ti/tj: (d_pad, V_pad) f32 VMEM (resident);
    out_ref: (1, tile_b) f32 (lane-dense, batch on lanes)."""
    d_pad, v_pad = ti_ref.shape
    tile_b = out_ref.shape[1]

    idx_i = idx_ref[0:1, :]                                    # (1, tile_b)
    idx_j = idx_ref[1:2, :]
    vocab_iota = lax.broadcasted_iota(jnp.int32, (v_pad, tile_b), 0)
    oh_i = (vocab_iota == idx_i).astype(jnp.float32)           # (V_pad, tile_b)
    oh_j = (vocab_iota == idx_j).astype(jnp.float32)

    # One-hot gather on the (otherwise idle) MXU: (d_pad,V_pad)@(V_pad,tile_b).
    e_i = jnp.dot(ti_ref[...], oh_i, preferred_element_type=jnp.float32)
    e_j = jnp.dot(tj_ref[...], oh_j, preferred_element_type=jnp.float32)

    # Bias already folded in via the [bias,1]/[1,bias] rows: just multiply+sum.
    out_ref[...] = jnp.sum(e_i * e_j, axis=0, keepdims=True)   # (1, tile_b)


def glove_forward_resident(x, table_i_t, table_j_t, *, tile_b=256):
    d_pad, v_pad = table_i_t.shape
    B = x.shape[1]
    b_pad = _round_up(max(B, 1), tile_b)
    idx = jnp.zeros((2, b_pad), jnp.int32).at[:, :B].set(x.astype(jnp.int32))
    n_tiles = b_pad // tile_b

    out = pl.pallas_call(
        _resident_kernel,
        out_shape=jax.ShapeDtypeStruct((1, b_pad), jnp.float32),
        grid_spec=pltpu.PrefetchScalarGridSpec(
            num_scalar_prefetch=0,
            grid=(n_tiles,),
            in_specs=[
                pl.BlockSpec((2, tile_b), lambda b: (0, b)),
                # Constant block index => table DMA'd into VMEM once, resident.
                pl.BlockSpec((d_pad, v_pad), lambda b: (0, 0)),
                pl.BlockSpec((d_pad, v_pad), lambda b: (0, 0)),
            ],
            out_specs=pl.BlockSpec((1, tile_b), lambda b: (0, b)),
        ),
        compiler_params=pltpu.CompilerParams(
            dimension_semantics=("parallel",),   # batch tiles shard across TCs
        ),
    )(idx, table_i_t, table_j_t)
    return out[0, :B]


# --------------------------------------------------------------------------
# Large-vocab path: HBM row gather, aggregate waits, cross-tile double buffer.
# --------------------------------------------------------------------------
def pack_tables_gather(embeddings, biases):
    """Pack (V, d_pad) row-major tables: cols [emb ; bias ; 1] / [emb ; 1 ; bias]."""
    V, D = embeddings.shape
    d_pad = _round_up(D + 2, 128)
    base = jnp.zeros((V, d_pad), jnp.float32)
    base = base.at[:, :D].set(embeddings.astype(jnp.float32))
    b = biases.astype(jnp.float32).reshape(V)
    ones = jnp.ones((V,), jnp.float32)
    table_i = base.at[:, D].set(b).at[:, D + 1].set(ones)
    table_j = base.at[:, D].set(ones).at[:, D + 1].set(b)
    return table_i, table_j


def _gather_kernel(idx_ref, ti_hbm, tj_hbm, out_ref, ei_buf, ej_buf, sems):
    """idx_ref: (2, b_pad) i32 SMEM (scalar prefetch); ti/tj: (V, d_pad) f32 HBM;
    out_ref: (1, tile_b) f32; ei/ej_buf: (2, tile_b, d_pad) f32 (double buffer);
    sems: DMA sems (2 roles, 2 slots)."""
    tile_b = ei_buf.shape[1]
    t = pl.program_id(0)
    n_t = pl.num_programs(0)
    slot = t % 2

    def issue_tile(tile_idx, slot_idx):
        base = tile_idx * tile_b

        def body(r, carry):
            ri = idx_ref[0, base + r]
            rj = idx_ref[1, base + r]
            pltpu.make_async_copy(
                ti_hbm.at[pl.ds(ri, 1), :],
                ei_buf.at[slot_idx, pl.ds(r, 1), :],
                sems.at[0, slot_idx],
            ).start()
            pltpu.make_async_copy(
                tj_hbm.at[pl.ds(rj, 1), :],
                ej_buf.at[slot_idx, pl.ds(r, 1), :],
                sems.at[1, slot_idx],
            ).start()
            return carry

        lax.fori_loop(0, tile_b, body, 0, unroll=8)

    # Prime slot 0 on the very first grid step.
    @pl.when(t == 0)
    def _():
        issue_tile(0, 0)

    # Prefetch tile t+1 into the other slot (overlaps with this tile's compute).
    @pl.when(t + 1 < n_t)
    def _():
        issue_tile(t + 1, 1 - slot)

    # ONE aggregate wait per buffer, sized to the whole slot (tile_b rows each
    # of identical size, so the byte counts match the sum of the row copies).
    pltpu.make_async_copy(
        ti_hbm.at[pl.ds(0, tile_b), :], ei_buf.at[slot], sems.at[0, slot]
    ).wait()
    pltpu.make_async_copy(
        tj_hbm.at[pl.ds(0, tile_b), :], ej_buf.at[slot], sems.at[1, slot]
    ).wait()

    e_i = ei_buf[slot]                   # (tile_b, d_pad)
    e_j = ej_buf[slot]
    m = e_i * e_j                        # bias folds in via [bias,1]/[1,bias] cols
    # Lane-dense (1, tile_b) output: transpose then sublane reduce.
    out_ref[...] = jnp.sum(m.T, axis=0, keepdims=True)


def glove_forward_gather(x, table_i, table_j, *, tile_b=256):
    V, d_pad = table_i.shape
    B = x.shape[1]
    b_pad = _round_up(max(B, 1), tile_b)
    # Clamp untrusted indices: an OOB row DMA would be a hard chip fault.
    x_c = jnp.clip(x.astype(jnp.int32), 0, V - 1)
    idx = jnp.zeros((2, b_pad), jnp.int32).at[:, :B].set(x_c)
    n_tiles = b_pad // tile_b

    out = pl.pallas_call(
        _gather_kernel,
        out_shape=jax.ShapeDtypeStruct((1, b_pad), jnp.float32),
        grid_spec=pltpu.PrefetchScalarGridSpec(
            num_scalar_prefetch=1,                          # indices -> SMEM
            grid=(n_tiles,),
            in_specs=[
                pl.BlockSpec(memory_space=pl.ANY),          # table_i stays in HBM
                pl.BlockSpec(memory_space=pl.ANY),          # table_j stays in HBM
            ],
            out_specs=pl.BlockSpec((1, tile_b), lambda b, idx: (0, b)),
            scratch_shapes=[
                pltpu.VMEM((2, tile_b, d_pad), jnp.float32),   # i rows, 2 slots
                pltpu.VMEM((2, tile_b, d_pad), jnp.float32),   # j rows, 2 slots
                pltpu.SemaphoreType.DMA((2, 2)),               # [role, slot]
            ],
        ),
        compiler_params=pltpu.CompilerParams(
            # Cross-step prefetch carries state between grid iterations, so the
            # batch axis must stay sequential on every core ("arbitrary").
            dimension_semantics=("arbitrary",),
        ),
    )(idx, table_i, table_j)
    return out[0, :B]


# --------------------------------------------------------------------------
# Dispatcher + reference
# --------------------------------------------------------------------------
def glove_forward(x, embeddings, biases, *, tile_b=None, force_gather=False):
    """x: (2, B) int; embeddings: (V, D) f32; biases: (V, 1) f32 -> (B,) f32.

    NOTE: in a real model, call pack_tables_* once outside the step function
    and reuse the packed tables; packing here per call keeps the demo simple.
    """
    V, _ = embeddings.shape
    v_pad = _round_up(V, 128)
    use_resident = (not force_gather) and v_pad <= 2048
    if use_resident:
        ti, tj = pack_tables_resident(embeddings, biases)
        return glove_forward_resident(x, ti, tj, tile_b=tile_b or 256)
    ti, tj = pack_tables_gather(embeddings, biases)
    return glove_forward_gather(x, ti, tj, tile_b=tile_b or 256)


def glove_reference(x, embeddings, biases):
    e_i = embeddings[x[0]]
    e_j = embeddings[x[1]]
    dot = jnp.sum(e_i * e_j, axis=1)
    return dot + biases[x[0]].reshape(-1) + biases[x[1]].reshape(-1)


if __name__ == "__main__":
    num_embeddings = 256   # V
    embedding_dim = 32     # D
    batch = 200            # B (not a multiple of the tile -> exercises padding)

    key = jax.random.PRNGKey(0)
    k_emb, k_bias, k_idx = jax.random.split(key, 3)

    embeddings = jax.random.normal(
        k_emb, (num_embeddings, embedding_dim), dtype=jnp.float32)
    biases = jax.random.normal(k_bias, (num_embeddings, 1), dtype=jnp.float32)
    x = jax.random.randint(k_idx, (2, batch), 0, num_embeddings, dtype=jnp.int32)

    ref = glove_reference(x, embeddings, biases)

    # Fast path: VMEM-resident tables + one-hot MXU gather.
    out_res = jax.block_until_ready(glove_forward(x, embeddings, biases))
    assert out_res.shape == (batch,)
    assert jnp.allclose(out_res, ref, atol=1e-4, rtol=1e-4), (out_res, ref)

    # Large-vocab path: HBM row gather with aggregate waits + double buffering
    # (tile_b=128 so the 200-element batch spans 2 tiles and the cross-tile
    # prefetch is exercised).
    out_gat = jax.block_until_ready(
        glove_forward(x, embeddings, biases, force_gather=True, tile_b=128))
    assert out_gat.shape == (batch,)
    assert jnp.allclose(out_gat, ref, atol=1e-4, rtol=1e-4), (out_gat, ref)

    print("KERNEL_OK")
</pallas_src>

<mosaic_0001>
module attributes {stable_mosaic.version = 11 : i64} {
  func.func @_resident_kernel(%arg0: i32, %arg1: memref<2x256xi32, #tpu.memory_space<vmem>>, %arg2: memref<40x256xf32, #tpu.memory_space<vmem>>, %arg3: memref<40x256xf32, #tpu.memory_space<vmem>>, %arg4: memref<1x256xf32, #tpu.memory_space<vmem>>) attributes {dimension_semantics = [#tpu.dimension_semantics<parallel>], iteration_bounds = array<i64: 1>, scalar_prefetch = 0 : i64, scratch_operands = 0 : i64, tpu.core_type = #tpu.core_type<tc>, window_params = [{transform_indices = @transform_0, window_bounds = array<i64: 2, 256>}, {pipeline_mode = #tpu.pipeline_mode<synchronous>, transform_indices = @transform_1, window_bounds = array<i64: 40, 256>}, {pipeline_mode = #tpu.pipeline_mode<synchronous>, transform_indices = @transform_2, window_bounds = array<i64: 40, 256>}, {transform_indices = @transform_3, window_bounds = array<i64: 1, 256>}]} {
    %c0 = arith.constant 0 : index
    %c0_0 = arith.constant 0 : index
    %0 = vector.load %arg1[%c0, %c0_0] : memref<2x256xi32, #tpu.memory_space<vmem>>, vector<1x256xi32>
    %c1 = arith.constant 1 : index
    %c0_1 = arith.constant 0 : index
    %1 = vector.load %arg1[%c1, %c0_1] : memref<2x256xi32, #tpu.memory_space<vmem>>, vector<1x256xi32>
    %2 = tpu.iota {dimensions = array<i32: 0>} : vector<256x256xi32>
    %3 = vector.broadcast %0 : vector<1x256xi32> to vector<256x256xi32>
    %4 = arith.cmpi eq, %2, %3 : vector<256x256xi32>
    %5 = arith.extui %4 : vector<256x256xi1> to vector<256x256xi32>
    %6 = arith.sitofp %5 : vector<256x256xi32> to vector<256x256xf32>
    %7 = vector.broadcast %1 : vector<1x256xi32> to vector<256x256xi32>
    %8 = arith.cmpi eq, %2, %7 : vector<256x256xi32>
    %9 = arith.extui %8 : vector<256x256xi1> to vector<256x256xi32>
    %10 = arith.sitofp %9 : vector<256x256xi32> to vector<256x256xf32>
    %c0_2 = arith.constant 0 : index
    %c0_3 = arith.constant 0 : index
    %11 = vector.load %arg2[%c0_2, %c0_3] : memref<40x256xf32, #tpu.memory_space<vmem>>, vector<40x256xf32>
    %cst = arith.constant dense<0.000000e+00> : vector<40x256xf32>
    %12 = tpu.matmul %11, %6, %cst {dimension_numbers = #tpu.dot_dimension_numbers<[1], [0], [0], [1], [0, 0, 1, 1], [], []>} : vector<40x256xf32>, vector<256x256xf32>, vector<40x256xf32> -> vector<40x256xf32>
    %c0_4 = arith.constant 0 : index
    %c0_5 = arith.constant 0 : index
    %13 = vector.load %arg3[%c0_4, %c0_5] : memref<40x256xf32, #tpu.memory_space<vmem>>, vector<40x256xf32>
    %cst_6 = arith.constant dense<0.000000e+00> : vector<40x256xf32>
    %14 = tpu.matmul %13, %10, %cst_6 {dimension_numbers = #tpu.dot_dimension_numbers<[1], [0], [0], [1], [0, 0, 1, 1], [], []>} : vector<40x256xf32>, vector<256x256xf32>, vector<40x256xf32> -> vector<40x256xf32>
    %15 = arith.mulf %12, %14 : vector<40x256xf32>
    %cst_7 = arith.constant dense<0.000000e+00> : vector<256xf32>
    %16 = vector.multi_reduction <add>, %15, %cst_7 [0] : vector<40x256xf32> to vector<256xf32>
    %17 = vector.shape_cast %16 : vector<256xf32> to vector<1x256xf32>
    %c0_8 = arith.constant 0 : index
    %c0_9 = arith.constant 0 : index
    %18 = vector.load %arg4[%c0_8, %c0_9] : memref<1x256xf32, #tpu.memory_space<vmem>>, vector<1x256xf32>
    tpu.vector_store %arg4[%c0_8, %c0_9], %17 {strides = array<i32>} : memref<1x256xf32, #tpu.memory_space<vmem>>, vector<1x256xf32>,
    return
  }
  func.func @transform_0(%arg0: i32) -> (i32, i32) {
    %c0_i32 = arith.constant 0 : i32
    %c0_i32_0 = arith.constant 0 : i32
    return %c0_i32, %arg0 : i32, i32
  }
  func.func @transform_1(%arg0: i32) -> (i32, i32) {
    %c0_i32 = arith.constant 0 : i32
    %c0_i32_0 = arith.constant 0 : i32
    %c0_i32_1 = arith.constant 0 : i32
    return %c0_i32, %c0_i32_0 : i32, i32
  }
  func.func @transform_2(%arg0: i32) -> (i32, i32) {
    %c0_i32 = arith.constant 0 : i32
    %c0_i32_0 = arith.constant 0 : i32
    %c0_i32_1 = arith.constant 0 : i32
    return %c0_i32, %c0_i32_0 : i32, i32
  }
  func.func @transform_3(%arg0: i32) -> (i32, i32) {
    %c0_i32 = arith.constant 0 : i32
    %c0_i32_0 = arith.constant 0 : i32
    return %c0_i32, %arg0 : i32, i32
  }
}

</mosaic_0001>

<llo_original>
// kernel: tpu_custom_call.1
$region0: #{tpu_custom_call.1}
  #allocation0 [shape = 'u32[]', space=smem, size = 0x4, offset = 0x4, fixed_abs, tag = 'smem constant byte address 0x4 - core index']
  #allocation1 [shape = 'u32[144,128]{1,0:T(1,128)}', space=vmem, size = 0x12000, scoped, tag = 'internal scratch']
  %s0 = inlined_call_operand.hbm [shape: s32[2,256], index: 0, kind: input, shape index: {}]
  %s1 = inlined_call_operand.hbm [shape: f32[40,256], index: 1, kind: input, shape index: {}]
  %s2 = inlined_call_operand.hbm [shape: f32[40,256], index: 2, kind: input, shape index: {}]
  %s3 = inlined_call_operand.hbm [shape: f32[1,256], index: 3, kind: output, shape index: {}]
  %s4 = sld [smem:[#allocation0]]
  $region34: #{tpu_custom_call.1} parent=0
    _
  %s6 = ssub.s32 1, %s4
  %s7 = scalar_select 0, %s6, %s4
  $region1: #{tpu_custom_call.1} parent=0
    #allocation2 [shape = 'u8[2048]{0}', space=vmem, size = 0x800, scoped, tag = 'input window, operand 0, single buffered']
    #allocation3 [shape = 's32[1]{0}', space=sflag, size = 0x4, scoped, tag = 'scoped memory for tpu_custom_call.1']
    #allocation4 [shape = 's32[1]{0}', space=sflag, size = 0x4, scoped, tag = 'scoped memory for tpu_custom_call.1']
    #allocation5 [shape = 'u8[40960]{0}', space=vmem, size = 0xa000, scoped, tag = 'input window, operand 1, single buffered']
    #allocation6 [shape = 's32[1]{0}', space=sflag, size = 0x4, scoped, tag = 'scoped memory for tpu_custom_call.1']
    #allocation7 [shape = 'u8[40960]{0}', space=vmem, size = 0xa000, scoped, tag = 'input window, operand 2, single buffered']
    #allocation8 [shape = 'u8[1024]{0}', space=vmem, size = 0x400, scoped, tag = 'output window, operand 0, single buffered']
    %8 = vsyncpa [#allocation3], 0
    %9 = vsyncpa [#allocation6], 0
    %10 = vsyncpa [#allocation4], 0
    // Predicated region
    $region2: #{tpu_custom_call.1} parent=1 // pred_check
      _
    $region3: #{tpu_custom_call.1} parent=1 // pred_check_branch
      %12 = sbr.rel (0) target = $region5
    $region4: #{tpu_custom_call.1} parent=1 // pred_region
      %s14 = ssub.s32 64, 64
      %15 = vsyncadd [#allocation3], %s14
      %s17 = sshll.u32 [#allocation2], 4
      %s18 = int_to_ptr.vmem [resolvable:$true] %s17
      %20 = dma.hbm_to_vmem [thread:$0]  %s0, 64, %s18, [#allocation3]
    $region5: #{tpu_custom_call.1} parent=1 // pred_fallthru
      _
    // Predicated region
    $region6: #{tpu_custom_call.1} parent=1 // pred_check
      _
    $region7: #{tpu_custom_call.1} parent=1 // pred_check_branch
      %22 = sbr.rel (0) target = $region9
    $region8: #{tpu_custom_call.1} parent=1 // pred_region
      %s24 = ssub.s32 1280, 1280
      %25 = vsyncadd [#allocation6], %s24
      %s26 = sshll.u32 [#allocation5], 4
      %s27 = int_to_ptr.vmem [resolvable:$true] %s26
      %32 = dma.hbm_to_vmem [thread:$0]  %s1, 1280, %s27, [#allocation6], 256, 256, 16
    $region9: #{tpu_custom_call.1} parent=1 // pred_fallthru
      _
    // Predicated region
    $region10: #{tpu_custom_call.1} parent=1 // pred_check
      _
    $region11: #{tpu_custom_call.1} parent=1 // pred_check_branch
      %34 = sbr.rel (0) target = $region13
    $region12: #{tpu_custom_call.1} parent=1 // pred_region
      %s36 = ssub.s32 1280, 1280
      %37 = vsyncadd [#allocation6], %s36
      %s38 = sshll.u32 [#allocation7], 4
      %s39 = int_to_ptr.vmem [resolvable:$true] %s38
      %44 = dma.hbm_to_vmem [thread:$0]  %s2, 1280, %s39, [#allocation6], 256, 256, 16
    $region13: #{tpu_custom_call.1} parent=1 // pred_fallthru
      _
    // Predicated region
    $region14: #{tpu_custom_call.1} parent=1 // pred_check
      _
    $region15: #{tpu_custom_call.1} parent=1 // pred_check_branch
      %46 = sbr.rel (0) target = $region17
    $region16: #{tpu_custom_call.1} parent=1 // pred_region
      %47 = dma.done [#allocation3], 64
    $region17: #{tpu_custom_call.1} parent=1 // pred_fallthru
      _
    // Predicated region
    $region18: #{tpu_custom_call.1} parent=1 // pred_check
      _
    $region19: #{tpu_custom_call.1} parent=1 // pred_check_branch
      %49 = sbr.rel (0) target = $region21
    $region20: #{tpu_custom_call.1} parent=1 // pred_region
      %50 = dma.done [#allocation6], 1280
    $region21: #{tpu_custom_call.1} parent=1 // pred_fallthru
      _
    // Predicated region
    $region22: #{tpu_custom_call.1} parent=1 // pred_check
      _
    $region23: #{tpu_custom_call.1} parent=1 // pred_check_branch
      %52 = sbr.rel (0) target = $region25
    $region24: #{tpu_custom_call.1} parent=1 // pred_region
      %53 = dma.done [#allocation6], 1280
    $region25: #{tpu_custom_call.1} parent=1 // pred_fallthru
      _
    %v54 = vld [vmem:[#allocation2] ss:$2 sm:$0x3]
    %s55 = scalar_lea.vmem [#allocation2], 1
    %v56 = vld [vmem:[%s55] ss:$2 sm:$0x3]
    %v57 = vlaneseq
    %v58 = vshrl.u32 %v57, 7
    %v59 = vadd.s32 %v58, 8
    %v60 = vadd.s32 %v58, 16
    %v61 = vadd.s32 %v58, 24
    %v62 = vadd.s32 %v58, 32
    %v63 = vadd.s32 %v58, 40
    %v64 = vadd.s32 %v58, 48
    %v65 = vadd.s32 %v58, 56
    %v66 = vadd.s32 %v58, 64
    %v67 = vadd.s32 %v58, 72
    %v68 = vadd.s32 %v58, 80
    %v69 = vadd.s32 %v58, 88
    %v70 = vadd.s32 %v58, 96
    %v71 = vadd.s32 %v58, 104
    %v72 = vadd.s32 %v58, 112
    %v73 = vadd.s32 %v58, 120
    %v74 = vadd.s32 %v58, 128
    %v75 = vadd.s32 %v58, 136
    %v76 = vadd.s32 %v58, 144
    %v77 = vadd.s32 %v58, 152
    %v78 = vadd.s32 %v58, 160
    %v79 = vadd.s32 %v58, 168
    %v80 = vadd.s32 %v58, 176
    %v81 = vadd.s32 %v58, 184
    %v82 = vadd.s32 %v58, 192
    %v83 = vadd.s32 %v58, 200
    %v84 = vadd.s32 %v58, 208
    %v85 = vadd.s32 %v58, 216
    %v86 = vadd.s32 %v58, 224
    %v87 = vadd.s32 %v58, 232
    %v88 = vadd.s32 %v58, 240
    %v89 = vadd.s32 %v58, 248
    %v90 = vlaneseq
    %v91 = vshrl.u32 %v90, 7
    %v92 = vsub.s32 0, %v91
    %v93 = vrot.slane %v54, %v92
    %v94 = vlaneseq
    %v95 = vshrl.u32 %v94, 7
    %v96 = vsub.s32 1, %v95
    %v97 = vrot.slane %v54, %v96
    %vm98 = vcmp.eq.s32.totalorder %v58, %v93
    %vm99 = vcmp.eq.s32.totalorder %v58, %v97
    %vm100 = vcmp.eq.s32.totalorder %v59, %v93
    %vm101 = vcmp.eq.s32.totalorder %v59, %v97
    %vm102 = vcmp.eq.s32.totalorder %v60, %v93
    %vm103 = vcmp.eq.s32.totalorder %v60, %v97
    %vm104 = vcmp.eq.s32.totalorder %v61, %v93
    %vm105 = vcmp.eq.s32.totalorder %v61, %v97
    %vm106 = vcmp.eq.s32.totalorder %v62, %v93
    %vm107 = vcmp.eq.s32.totalorder %v62, %v97
    %vm108 = vcmp.eq.s32.totalorder %v63, %v93
    %vm109 = vcmp.eq.s32.totalorder %v63, %v97
    %vm110 = vcmp.eq.s32.totalorder %v64, %v93
    %vm111 = vcmp.eq.s32.totalorder %v64, %v97
    %vm112 = vcmp.eq.s32.totalorder %v65, %v93
    %vm113 = vcmp.eq.s32.totalorder %v65, %v97
    %vm114 = vcmp.eq.s32.totalorder %v66, %v93
    %vm115 = vcmp.eq.s32.totalorder %v66, %v97
    %vm116 = vcmp.eq.s32.totalorder %v67, %v93
    %vm117 = vcmp.eq.s32.totalorder %v67, %v97
    %vm118 = vcmp.eq.s32.totalorder %v68, %v93
    %vm119 = vcmp.eq.s32.totalorder %v68, %v97
    %vm120 = vcmp.eq.s32.totalorder %v69, %v93
    %vm121 = vcmp.eq.s32.totalorder %v69, %v97
    %vm122 = vcmp.eq.s32.totalorder %v70, %v93
    %vm123 = vcmp.eq.s32.totalorder %v70, %v97
    %vm124 = vcmp.eq.s32.totalorder %v71, %v93
    %vm125 = vcmp.eq.s32.totalorder %v71, %v97
    %vm126 = vcmp.eq.s32.totalorder %v72, %v93
    %vm127 = vcmp.eq.s32.totalorder %v72, %v97
    %vm128 = vcmp.eq.s32.totalorder %v73, %v93
    %vm129 = vcmp.eq.s32.totalorder %v73, %v97
    %vm130 = vcmp.eq.s32.totalorder %v74, %v93
    %vm131 = vcmp.eq.s32.totalorder %v74, %v97
    %vm132 = vcmp.eq.s32.totalorder %v75, %v93
    %vm133 = vcmp.eq.s32.totalorder %v75, %v97
    %vm134 = vcmp.eq.s32.totalorder %v76, %v93
    %vm135 = vcmp.eq.s32.totalorder %v76, %v97
    %vm136 = vcmp.eq.s32.totalorder %v77, %v93
    %vm137 = vcmp.eq.s32.totalorder %v77, %v97
    %vm138 = vcmp.eq.s32.totalorder %v78, %v93
    %vm139 = vcmp.eq.s32.totalorder %v78, %v97
    %vm140 = vcmp.eq.s32.totalorder %v79, %v93
    %vm141 = vcmp.eq.s32.totalorder %v79, %v97
    %vm142 = vcmp.eq.s32.totalorder %v80, %v93
    %vm143 = vcmp.eq.s32.totalorder %v80, %v97
    %vm144 = vcmp.eq.s32.totalorder %v81, %v93
    %vm145 = vcmp.eq.s32.totalorder %v81, %v97
    %vm146 = vcmp.eq.s32.totalorder %v82, %v93
    %vm147 = vcmp.eq.s32.totalorder %v82, %v97
    %vm148 = vcmp.eq.s32.totalorder %v83, %v93
    %vm149 = vcmp.eq.s32.totalorder %v83, %v97
    %vm150 = vcmp.eq.s32.totalorder %v84, %v93
    %vm151 = vcmp.eq.s32.totalorder %v84, %v97
    %vm152 = vcmp.eq.s32.totalorder %v85, %v93
    %vm153 = vcmp.eq.s32.totalorder %v85, %v97
    %vm154 = vcmp.eq.s32.totalorder %v86, %v93
    %vm155 = vcmp.eq.s32.totalorder %v86, %v97
    %vm156 = vcmp.eq.s32.totalorder %v87, %v93
    %vm157 = vcmp.eq.s32.totalorder %v87, %v97
    %vm158 = vcmp.eq.s32.totalorder %v88, %v93
    %vm159 = vcmp.eq.s32.totalorder %v88, %v97
    %vm160 = vcmp.eq.s32.totalorder %v89, %v93
    %vm161 = vcmp.eq.s32.totalorder %v89, %v97
    %v162 = vsel %vm98, 1, 0
    %v163 = vsel %vm99, 1, 0
    %v164 = vsel %vm100, 1, 0
    %v165 = vsel %vm101, 1, 0
    %v166 = vsel %vm102, 1, 0
    %v167 = vsel %vm103, 1, 0
    %v168 = vsel %vm104, 1, 0
    %v169 = vsel %vm105, 1, 0
    %v170 = vsel %vm106, 1, 0
    %v171 = vsel %vm107, 1, 0
    %v172 = vsel %vm108, 1, 0
    %v173 = vsel %vm109, 1, 0
    %v174 = vsel %vm110, 1, 0
    %v175 = vsel %vm111, 1, 0
    %v176 = vsel %vm112, 1, 0
    %v177 = vsel %vm113, 1, 0
    %v178 = vsel %vm114, 1, 0
    %v179 = vsel %vm115, 1, 0
    %v180 = vsel %vm116, 1, 0
    %v181 = vsel %vm117, 1, 0
    %v182 = vsel %vm118, 1, 0
    %v183 = vsel %vm119, 1, 0
    %v184 = vsel %vm120, 1, 0
    %v185 = vsel %vm121, 1, 0
    %v186 = vsel %vm122, 1, 0
    %v187 = vsel %vm123, 1, 0
    %v188 = vsel %vm124, 1, 0
    %v189 = vsel %vm125, 1, 0
    %v190 = vsel %vm126, 1, 0
    %v191 = vsel %vm127, 1, 0
    %v192 = vsel %vm128, 1, 0
    %v193 = vsel %vm129, 1, 0
    %v194 = vsel %vm130, 1, 0
    %v195 = vsel %vm131, 1, 0
    %v196 = vsel %vm132, 1, 0
    %v197 = vsel %vm133, 1, 0
    %v198 = vsel %vm134, 1, 0
    %v199 = vsel %vm135, 1, 0
    %v200 = vsel %vm136, 1, 0
    %v201 = vsel %vm137, 1, 0
    %v202 = vsel %vm138, 1, 0
    %v203 = vsel %vm139, 1, 0
    %v204 = vsel %vm140, 1, 0
    %v205 = vsel %vm141, 1, 0
    %v206 = vsel %vm142, 1, 0
    %v207 = vsel %vm143, 1, 0
    %v208 = vsel %vm144, 1, 0
    %v209 = vsel %vm145, 1, 0
    %v210 = vsel %vm146, 1, 0
    %v211 = vsel %vm147, 1, 0
    %v212 = vsel %vm148, 1, 0
    %v213 = vsel %vm149, 1, 0
    %v214 = vsel %vm150, 1, 0
    %v215 = vsel %vm151, 1, 0
    %v216 = vsel %vm152, 1, 0
    %v217 = vsel %vm153, 1, 0
    %v218 = vsel %vm154, 1, 0
    %v219 = vsel %vm155, 1, 0
    %v220 = vsel %vm156, 1, 0
    %v221 = vsel %vm157, 1, 0
    %v222 = vsel %vm158, 1, 0
    %v223 = vsel %vm159, 1, 0
    %v224 = vsel %vm160, 1, 0
    %v225 = vsel %vm161, 1, 0
    %v226 = vcvt.s32.f32 %v162
    %v227 = vcvt.s32.f32 %v163
    %v228 = vcvt.s32.f32 %v164
    %v229 = vcvt.s32.f32 %v165
    %v230 = vcvt.s32.f32 %v166
    %v231 = vcvt.s32.f32 %v167
    %v232 = vcvt.s32.f32 %v168
    %v233 = vcvt.s32.f32 %v169
    %v234 = vcvt.s32.f32 %v170
    %v235 = vcvt.s32.f32 %v171
    %v236 = vcvt.s32.f32 %v172
    %v237 = vcvt.s32.f32 %v173
    %v238 = vcvt.s32.f32 %v174
    %v239 = vcvt.s32.f32 %v175
    %v240 = vcvt.s32.f32 %v176
    %v241 = vcvt.s32.f32 %v177
    %v242 = vcvt.s32.f32 %v178
    %v243 = vcvt.s32.f32 %v179
    %v244 = vcvt.s32.f32 %v180
    %v245 = vcvt.s32.f32 %v181
    %v246 = vcvt.s32.f32 %v182
    %v247 = vcvt.s32.f32 %v183
    %v248 = vcvt.s32.f32 %v184
    %v249 = vcvt.s32.f32 %v185
    %v250 = vcvt.s32.f32 %v186
    %v251 = vcvt.s32.f32 %v187
    %v252 = vcvt.s32.f32 %v188
    %v253 = vcvt.s32.f32 %v189
    %v254 = vcvt.s32.f32 %v190
    %v255 = vcvt.s32.f32 %v191
    %v256 = vcvt.s32.f32 %v192
    %v257 = vcvt.s32.f32 %v193
    %v258 = vcvt.s32.f32 %v194
    %v259 = vcvt.s32.f32 %v195
    %v260 = vcvt.s32.f32 %v196
    %v261 = vcvt.s32.f32 %v197
    %v262 = vcvt.s32.f32 %v198
    %v263 = vcvt.s32.f32 %v199
    %v264 = vcvt.s32.f32 %v200
    %v265 = vcvt.s32.f32 %v201
    %v266 = vcvt.s32.f32 %v202
    %v267 = vcvt.s32.f32 %v203
    %v268 = vcvt.s32.f32 %v204
    %v269 = vcvt.s32.f32 %v205
    %v270 = vcvt.s32.f32 %v206
    %v271 = vcvt.s32.f32 %v207
    %v272 = vcvt.s32.f32 %v208
    %v273 = vcvt.s32.f32 %v209
    %v274 = vcvt.s32.f32 %v210
    %v275 = vcvt.s32.f32 %v211
    %v276 = vcvt.s32.f32 %v212
    %v277 = vcvt.s32.f32 %v213
    %v278 = vcvt.s32.f32 %v214
    %v279 = vcvt.s32.f32 %v215
    %v280 = vcvt.s32.f32 %v216
    %v281 = vcvt.s32.f32 %v217
    %v282 = vcvt.s32.f32 %v218
    %v283 = vcvt.s32.f32 %v219
    %v284 = vcvt.s32.f32 %v220
    %v285 = vcvt.s32.f32 %v221
    %v286 = vcvt.s32.f32 %v222
    %v287 = vcvt.s32.f32 %v223
    %v288 = vcvt.s32.f32 %v224
    %v289 = vcvt.s32.f32 %v225
    %v290 = vlaneseq
    %v291 = vshrl.u32 %v290, 7
    %v292 = vsub.s32 0, %v291
    %v293 = vrot.slane %v56, %v292
    %v294 = vlaneseq
    %v295 = vshrl.u32 %v294, 7
    %v296 = vsub.s32 1, %v295
    %v297 = vrot.slane %v56, %v296
    %vm298 = vcmp.eq.s32.totalorder %v58, %v293
    %vm299 = vcmp.eq.s32.totalorder %v58, %v297
    %vm300 = vcmp.eq.s32.totalorder %v59, %v293
    %vm301 = vcmp.eq.s32.totalorder %v59, %v297
    %vm302 = vcmp.eq.s32.totalorder %v60, %v293
    %vm303 = vcmp.eq.s32.totalorder %v60, %v297
    %vm304 = vcmp.eq.s32.totalorder %v61, %v293
    %vm305 = vcmp.eq.s32.totalorder %v61, %v297
    %vm306 = vcmp.eq.s32.totalorder %v62, %v293
    %vm307 = vcmp.eq.s32.totalorder %v62, %v297
    %vm308 = vcmp.eq.s32.totalorder %v63, %v293
    %vm309 = vcmp.eq.s32.totalorder %v63, %v297
    %vm310 = vcmp.eq.s32.totalorder %v64, %v293
    %vm311 = vcmp.eq.s32.totalorder %v64, %v297
    %vm312 = vcmp.eq.s32.totalorder %v65, %v293
    %vm313 = vcmp.eq.s32.totalorder %v65, %v297
    %vm314 = vcmp.eq.s32.totalorder %v66, %v293
    %vm315 = vcmp.eq.s32.totalorder %v66, %v297
    %vm316 = vcmp.eq.s32.totalorder %v67, %v293
    %vm317 = vcmp.eq.s32.totalorder %v67, %v297
    %vm318 = vcmp.eq.s32.totalorder %v68, %v293
    %vm319 = vcmp.eq.s32.totalorder %v68, %v297
    %vm320 = vcmp.eq.s32.totalorder %v69, %v293
    %vm321 = vcmp.eq.s32.totalorder %v69, %v297
    %vm322 = vcmp.eq.s32.totalorder %v70, %v293
    %vm323 = vcmp.eq.s32.totalorder %v70, %v297
    %vm324 = vcmp.eq.s32.totalorder %v71, %v293
    %vm325 = vcmp.eq.s32.totalorder %v71, %v297
    %vm326 = vcmp.eq.s32.totalorder %v72, %v293
    %vm327 = vcmp.eq.s32.totalorder %v72, %v297
    %vm328 = vcmp.eq.s32.totalorder %v73, %v293
    %vm329 = vcmp.eq.s32.totalorder %v73, %v297
    %vm330 = vcmp.eq.s32.totalorder %v74, %v293
    %vm331 = vcmp.eq.s32.totalorder %v74, %v297
    %vm332 = vcmp.eq.s32.totalorder %v75, %v293
    %vm333 = vcmp.eq.s32.totalorder %v75, %v297
    %vm334 = vcmp.eq.s32.totalorder %v76, %v293
    %vm335 = vcmp.eq.s32.totalorder %v76, %v297
    %vm336 = vcmp.eq.s32.totalorder %v77, %v293
    %vm337 = vcmp.eq.s32.totalorder %v77, %v297
    %vm338 = vcmp.eq.s32.totalorder %v78, %v293
    %vm339 = vcmp.eq.s32.totalorder %v78, %v297
    %vm340 = vcmp.eq.s32.totalorder %v79, %v293
    %vm341 = vcmp.eq.s32.totalorder %v79, %v297
    %vm342 = vcmp.eq.s32.totalorder %v80, %v293
    %vm343 = vcmp.eq.s32.totalorder %v80, %v297
    %vm344 = vcmp.eq.s32.totalorder %v81, %v293
    %vm345 = vcmp.eq.s32.totalorder %v81, %v297
    %vm346 = vcmp.eq.s32.totalorder %v82, %v293
    %vm347 = vcmp.eq.s32.totalorder %v82, %v297
    %vm348 = vcmp.eq.s32.totalorder %v83, %v293
    %vm349 = vcmp.eq.s32.totalorder %v83, %v297
    %vm350 = vcmp.eq.s32.totalorder %v84, %v293
    %vm351 = vcmp.eq.s32.totalorder %v84, %v297
    %vm352 = vcmp.eq.s32.totalorder %v85, %v293
    %vm353 = vcmp.eq.s32.totalorder %v85, %v297
    %vm354 = vcmp.eq.s32.totalorder %v86, %v293
    %vm355 = vcmp.eq.s32.totalorder %v86, %v297
    %vm356 = vcmp.eq.s32.totalorder %v87, %v293
    %vm357 = vcmp.eq.s32.totalorder %v87, %v297
    %vm358 = vcmp.eq.s32.totalorder %v88, %v293
    %vm359 = vcmp.eq.s32.totalorder %v88, %v297
    %vm360 = vcmp.eq.s32.totalorder %v89, %v293
    %vm361 = vcmp.eq.s32.totalorder %v89, %v297
    %v362 = vsel %vm298, 1, 0
    %v363 = vsel %vm299, 1, 0
    %v364 = vsel %vm300, 1, 0
    %v365 = vsel %vm301, 1, 0
    %v366 = vsel %vm302, 1, 0
    %v367 = vsel %vm303, 1, 0
    %v368 = vsel %vm304, 1, 0
    %v369 = vsel %vm305, 1, 0
    %v370 = vsel %vm306, 1, 0
    %v371 = vsel %vm307, 1, 0
    %v372 = vsel %vm308, 1, 0
    %v373 = vsel %vm309, 1, 0
    %v374 = vsel %vm310, 1, 0
    %v375 = vsel %vm311, 1, 0
    %v376 = vsel %vm312, 1, 0
    %v377 = vsel %vm313, 1, 0
    %v378 = vsel %vm314, 1, 0
    %v379 = vsel %vm315, 1, 0
    %v380 = vsel %vm316, 1, 0
    %v381 = vsel %vm317, 1, 0
    %v382 = vsel %vm318, 1, 0
    %v383 = vsel %vm319, 1, 0
    %v384 = vsel %vm320, 1, 0
    %v385 = vsel %vm321, 1, 0
    %v386 = vsel %vm322, 1, 0
    %v387 = vsel %vm323, 1, 0
    %v388 = vsel %vm324, 1, 0
    %v389 = vsel %vm325, 1, 0
    %v390 = vsel %vm326, 1, 0
    %v391 = vsel %vm327, 1, 0
    %v392 = vsel %vm328, 1, 0
    %v393 = vsel %vm329, 1, 0
    %v394 = vsel %vm330, 1, 0
    %v395 = vsel %vm331, 1, 0
    %v396 = vsel %vm332, 1, 0
    %v397 = vsel %vm333, 1, 0
    %v398 = vsel %vm334, 1, 0
    %v399 = vsel %vm335, 1, 0
    %v400 = vsel %vm336, 1, 0
    %v401 = vsel %vm337, 1, 0
    %v402 = vsel %vm338, 1, 0
    %v403 = vsel %vm339, 1, 0
    %v404 = vsel %vm340, 1, 0
    %v405 = vsel %vm341, 1, 0
    %v406 = vsel %vm342, 1, 0
    %v407 = vsel %vm343, 1, 0
    %v408 = vsel %vm344, 1, 0
    %v409 = vsel %vm345, 1, 0
    %v410 = vsel %vm346, 1, 0
    %v411 = vsel %vm347, 1, 0
    %v412 = vsel %vm348, 1, 0
    %v413 = vsel %vm349, 1, 0
    %v414 = vsel %vm350, 1, 0
    %v415 = vsel %vm351, 1, 0
    %v416 = vsel %vm352, 1, 0
    %v417 = vsel %vm353, 1, 0
    %v418 = vsel %vm354, 1, 0
    %v419 = vsel %vm355, 1, 0
    %v420 = vsel %vm356, 1, 0
    %v421 = vsel %vm357, 1, 0
    %v422 = vsel %vm358, 1, 0
    %v423 = vsel %vm359, 1, 0
    %v424 = vsel %vm360, 1, 0
    %v425 = vsel %vm361, 1, 0
    %v426 = vcvt.s32.f32 %v362
    %v427 = vcvt.s32.f32 %v363
    %v428 = vcvt.s32.f32 %v364
    %v429 = vcvt.s32.f32 %v365
    %v430 = vcvt.s32.f32 %v366
    %v431 = vcvt.s32.f32 %v367
    %v432 = vcvt.s32.f32 %v368
    %v433 = vcvt.s32.f32 %v369
    %v434 = vcvt.s32.f32 %v370
    %v435 = vcvt.s32.f32 %v371
    %v436 = vcvt.s32.f32 %v372
    %v437 = vcvt.s32.f32 %v373
    %v438 = vcvt.s32.f32 %v374
    %v439 = vcvt.s32.f32 %v375
    %v440 = vcvt.s32.f32 %v376
    %v441 = vcvt.s32.f32 %v377
    %v442 = vcvt.s32.f32 %v378
    %v443 = vcvt.s32.f32 %v379
    %v444 = vcvt.s32.f32 %v380
    %v445 = vcvt.s32.f32 %v381
    %v446 = vcvt.s32.f32 %v382
    %v447 = vcvt.s32.f32 %v383
    %v448 = vcvt.s32.f32 %v384
    %v449 = vcvt.s32.f32 %v385
    %v450 = vcvt.s32.f32 %v386
    %v451 = vcvt.s32.f32 %v387
    %v452 = vcvt.s32.f32 %v388
    %v453 = vcvt.s32.f32 %v389
    %v454 = vcvt.s32.f32 %v390
    %v455 = vcvt.s32.f32 %v391
    %v456 = vcvt.s32.f32 %v392
    %v457 = vcvt.s32.f32 %v393
    %v458 = vcvt.s32.f32 %v394
    %v459 = vcvt.s32.f32 %v395
    %v460 = vcvt.s32.f32 %v396
    %v461 = vcvt.s32.f32 %v397
    %v462 = vcvt.s32.f32 %v398
    %v463 = vcvt.s32.f32 %v399
    %v464 = vcvt.s32.f32 %v400
    %v465 = vcvt.s32.f32 %v401
    %v466 = vcvt.s32.f32 %v402
    %v467 = vcvt.s32.f32 %v403
    %v468 = vcvt.s32.f32 %v404
    %v469 = vcvt.s32.f32 %v405
    %v470 = vcvt.s32.f32 %v406
    %v471 = vcvt.s32.f32 %v407
    %v472 = vcvt.s32.f32 %v408
    %v473 = vcvt.s32.f32 %v409
    %v474 = vcvt.s32.f32 %v410
    %v475 = vcvt.s32.f32 %v411
    %v476 = vcvt.s32.f32 %v412
    %v477 = vcvt.s32.f32 %v413
    %v478 = vcvt.s32.f32 %v414
    %v479 = vcvt.s32.f32 %v415
    %v480 = vcvt.s32.f32 %v416
    %v481 = vcvt.s32.f32 %v417
    %v482 = vcvt.s32.f32 %v418
    %v483 = vcvt.s32.f32 %v419
    %v484 = vcvt.s32.f32 %v420
    %v485 = vcvt.s32.f32 %v421
    %v486 = vcvt.s32.f32 %v422
    %v487 = vcvt.s32.f32 %v423
    %v488 = vcvt.s32.f32 %v424
    %v489 = vcvt.s32.f32 %v425
    %v490 = vld [vmem:[#allocation5] sm:$0xff]
    %v491 = vld [vmem:[#allocation5 + $0x8] sm:$0xff]
    %v492 = vld [vmem:[#allocation5 + $0x10] sm:$0xff]
    %v493 = vld [vmem:[#allocation5 + $0x18] sm:$0xff]
    %v494 = vld [vmem:[#allocation5 + $0x20] sm:$0xff]
    %v495 = vld [vmem:[#allocation5 + $0x28] sm:$0xff]
    %v496 = vld [vmem:[#allocation5 + $0x30] sm:$0xff]
    %v497 = vld [vmem:[#allocation5 + $0x38] sm:$0xff]
    %v498 = vld [vmem:[#allocation5 + $0x40] sm:$0xff]
    %v499 = vld [vmem:[#allocation5 + $0x48] sm:$0xff]
    %500 = vmatprep.subr.mxu0 %v227
    %501 = vmatpush1.msra.mxu0 %v226
    %502 = vmatprep.subr.mxu0 %v229
    %503 = vmatpush1.msra.mxu0 %v228
    %504 = vmatprep.subr.mxu0 %v231
    %505 = vmatpush1.msra.mxu0 %v230
    %506 = vmatprep.subr.mxu0 %v233
    %507 = vmatpush1.msra.mxu0 %v232
    %508 = vmatprep.subr.mxu0 %v235
    %509 = vmatpush1.msra.mxu0 %v234
    %510 = vmatprep.subr.mxu0 %v237
    %511 = vmatpush1.msra.mxu0 %v236
    %512 = vmatprep.subr.mxu0 %v239
    %513 = vmatpush1.msra.mxu0 %v238
    %514 = vmatprep.subr.mxu0 %v241
    %515 = vmatpush1.msra.mxu0 %v240
    %516 = vmatprep.subr.mxu0 %v243
    %517 = vmatpush1.msra.mxu0 %v242
    %518 = vmatprep.subr.mxu0 %v245
    %519 = vmatpush1.msra.mxu0 %v244
    %520 = vmatprep.subr.mxu0 %v247
    %521 = vmatpush1.msra.mxu0 %v246
    %522 = vmatprep.subr.mxu0 %v249
    %523 = vmatpush1.msra.mxu0 %v248
    %524 = vmatprep.subr.mxu0 %v251
    %525 = vmatpush1.msra.mxu0 %v250
    %526 = vmatprep.subr.mxu0 %v253
    %527 = vmatpush1.msra.mxu0 %v252
    %528 = vmatprep.subr.mxu0 %v255
    %529 = vmatpush1.msra.mxu0 %v254
    %530 = vmatprep.subr.mxu0 %v257
    %531 = vmatpush1.msra.mxu0 %v256
    %532 = vmatprep.subr.mxu0 %v259
    %533 = vmatpush1.msra.mxu0 %v258
    %534 = vmatprep.subr.mxu0 %v261
    %535 = vmatpush1.msra.mxu0 %v260
    %536 = vmatprep.subr.mxu0 %v263
    %537 = vmatpush1.msra.mxu0 %v262
    %538 = vmatprep.subr.mxu0 %v265
    %539 = vmatpush1.msra.mxu0 %v264
    %540 = vmatprep.subr.mxu0 %v267
    %541 = vmatpush1.msra.mxu0 %v266
    %542 = vmatprep.subr.mxu0 %v269
    %543 = vmatpush1.msra.mxu0 %v268
    %544 = vmatprep.subr.mxu0 %v271
    %545 = vmatpush1.msra.mxu0 %v270
    %546 = vmatprep.subr.mxu0 %v273
    %547 = vmatpush1.msra.mxu0 %v272
    %548 = vmatprep.subr.mxu0 %v275
    %549 = vmatpush1.msra.mxu0 %v274
    %550 = vmatprep.subr.mxu0 %v277
    %551 = vmatpush1.msra.mxu0 %v276
    %552 = vmatprep.subr.mxu0 %v279
    %553 = vmatpush1.msra.mxu0 %v278
    %554 = vmatprep.subr.mxu0 %v281
    %555 = vmatpush1.msra.mxu0 %v280
    %556 = vmatprep.subr.mxu0 %v283
    %557 = vmatpush1.msra.mxu0 %v282
    %558 = vmatprep.subr.mxu0 %v285
    %559 = vmatpush1.msra.mxu0 %v284
    %560 = vmatprep.subr.mxu0 %v287
    %561 = vmatpush1.msra.mxu0 %v286
    %562 = vmatprep.subr.mxu0 %v289
    %563 = vmatpush1.msra.mxu0 %v288
    %564 = vmatprep.mubr.f32.mxu0 %v491
    %565 = vmatmul.mubr.f32.gmra.mrb[0].mxu0 %v490
    %v566 = vpop.f32.mrb[0].mxu0
    %v567 = vadd.f32 0.0, %v566
    %v568 = vpop.f32.mrb[0].mxu0
    %v569 = vadd.f32 0.0, %v568
    %570 = vmatprep.mubr.f32.mxu0 %v493
    %571 = vmatmul.mubr.f32.gmra.mrb[0].mxu0 %v492
    %v572 = vpop.f32.mrb[0].mxu0
    %v573 = vadd.f32 0.0, %v572
    %v574 = vpop.f32.mrb[0].mxu0
    %v575 = vadd.f32 0.0, %v574
    %576 = vmatprep.mubr.f32.mxu0 %v495
    %577 = vmatmul.mubr.f32.gmra.mrb[0].mxu0 %v494
    %v578 = vpop.f32.mrb[0].mxu0
    %v579 = vadd.f32 0.0, %v578
    %v580 = vpop.f32.mrb[0].mxu0
    %v581 = vadd.f32 0.0, %v580
    %582 = vmatprep.mubr.f32.mxu0 %v497
    %583 = vmatmul.mubr.f32.gmra.mrb[0].mxu0 %v496
    %v584 = vpop.f32.mrb[0].mxu0
    %v585 = vadd.f32 0.0, %v584
    %v586 = vpop.f32.mrb[0].mxu0
    %v587 = vadd.f32 0.0, %v586
    %588 = vmatprep.mubr.f32.mxu0 %v499
    %589 = vmatmul.mubr.f32.gmra.mrb[0].mxu0 %v498
    %v590 = vpop.f32.mrb[0].mxu0
    %v591 = vadd.f32 0.0, %v590
    %v592 = vpop.f32.mrb[0].mxu0
    %v593 = vadd.f32 0.0, %v592
    %594 = vdwg.mxu0
    %v595 = vld [vmem:[#allocation7] sm:$0xff]
    %v596 = vld [vmem:[#allocation7 + $0x8] sm:$0xff]
    %v597 = vld [vmem:[#allocation7 + $0x10] sm:$0xff]
    %v598 = vld [vmem:[#allocation7 + $0x18] sm:$0xff]
    %v599 = vld [vmem:[#allocation7 + $0x20] sm:$0xff]
    %v600 = vld [vmem:[#allocation7 + $0x28] sm:$0xff]
    %v601 = vld [vmem:[#allocation7 + $0x30] sm:$0xff]
    %v602 = vld [vmem:[#allocation7 + $0x38] sm:$0xff]
    %v603 = vld [vmem:[#allocation7 + $0x40] sm:$0xff]
    %v604 = vld [vmem:[#allocation7 + $0x48] sm:$0xff]
    %605 = vmatprep.subr.mxu0 %v427
    %606 = vmatpush1.msra.mxu0 %v426
    %607 = vmatprep.subr.mxu0 %v429
    %608 = vmatpush1.msra.mxu0 %v428
    %609 = vmatprep.subr.mxu0 %v431
    %610 = vmatpush1.msra.mxu0 %v430
    %611 = vmatprep.subr.mxu0 %v433
    %612 = vmatpush1.msra.mxu0 %v432
    %613 = vmatprep.subr.mxu0 %v435
    %614 = vmatpush1.msra.mxu0 %v434
    %615 = vmatprep.subr.mxu0 %v437
    %616 = vmatpush1.msra.mxu0 %v436
    %617 = vmatprep.subr.mxu0 %v439
    %618 = vmatpush1.msra.mxu0 %v438
    %619 = vmatprep.subr.mxu0 %v441
    %620 = vmatpush1.msra.mxu0 %v440
    %621 = vmatprep.subr.mxu0 %v443
    %622 = vmatpush1.msra.mxu0 %v442
    %623 = vmatprep.subr.mxu0 %v445
    %624 = vmatpush1.msra.mxu0 %v444
    %625 = vmatprep.subr.mxu0 %v447
    %626 = vmatpush1.msra.mxu0 %v446
    %627 = vmatprep.subr.mxu0 %v449
    %628 = vmatpush1.msra.mxu0 %v448
    %629 = vmatprep.subr.mxu0 %v451
    %630 = vmatpush1.msra.mxu0 %v450
    %631 = vmatprep.subr.mxu0 %v453
    %632 = vmatpush1.msra.mxu0 %v452
    %633 = vmatprep.subr.mxu0 %v455
    %634 = vmatpush1.msra.mxu0 %v454
    %635 = vmatprep.subr.mxu0 %v457
    %636 = vmatpush1.msra.mxu0 %v456
    %637 = vmatprep.subr.mxu0 %v459
    %638 = vmatpush1.msra.mxu0 %v458
    %639 = vmatprep.subr.mxu0 %v461
    %640 = vmatpush1.msra.mxu0 %v460
    %641 = vmatprep.subr.mxu0 %v463
    %642 = vmatpush1.msra.mxu0 %v462
    %643 = vmatprep.subr.mxu0 %v465
    %644 = vmatpush1.msra.mxu0 %v464
    %645 = vmatprep.subr.mxu0 %v467
    %646 = vmatpush1.msra.mxu0 %v466
    %647 = vmatprep.subr.mxu0 %v469
    %648 = vmatpush1.msra.mxu0 %v468
    %649 = vmatprep.subr.mxu0 %v471
    %650 = vmatpush1.msra.mxu0 %v470
    %651 = vmatprep.subr.mxu0 %v473
    %652 = vmatpush1.msra.mxu0 %v472
    %653 = vmatprep.subr.mxu0 %v475
    %654 = vmatpush1.msra.mxu0 %v474
    %655 = vmatprep.subr.mxu0 %v477
    %656 = vmatpush1.msra.mxu0 %v476
    %657 = vmatprep.subr.mxu0 %v479
    %658 = vmatpush1.msra.mxu0 %v478
    %659 = vmatprep.subr.mxu0 %v481
    %660 = vmatpush1.msra.mxu0 %v480
    %661 = vmatprep.subr.mxu0 %v483
    %662 = vmatpush1.msra.mxu0 %v482
    %663 = vmatprep.subr.mxu0 %v485
    %664 = vmatpush1.msra.mxu0 %v484
    %665 = vmatprep.subr.mxu0 %v487
    %666 = vmatpush1.msra.mxu0 %v486
    %667 = vmatprep.subr.mxu0 %v489
    %668 = vmatpush1.msra.mxu0 %v488
    %669 = vmatprep.mubr.f32.mxu0 %v596
    %670 = vmatmul.mubr.f32.gmra.mrb[0].mxu0 %v595
    %v671 = vpop.f32.mrb[0].mxu0
    %v672 = vadd.f32 0.0, %v671
    %v673 = vpop.f32.mrb[0].mxu0
    %v674 = vadd.f32 0.0, %v673
    %675 = vmatprep.mubr.f32.mxu0 %v598
    %676 = vmatmul.mubr.f32.gmra.mrb[0].mxu0 %v597
    %v677 = vpop.f32.mrb[0].mxu0
    %v678 = vadd.f32 0.0, %v677
    %v679 = vpop.f32.mrb[0].mxu0
    %v680 = vadd.f32 0.0, %v679
    %681 = vmatprep.mubr.f32.mxu0 %v600
    %682 = vmatmul.mubr.f32.gmra.mrb[0].mxu0 %v599
    %v683 = vpop.f32.mrb[0].mxu0
    %v684 = vadd.f32 0.0, %v683
    %v685 = vpop.f32.mrb[0].mxu0
    %v686 = vadd.f32 0.0, %v685
    %687 = vmatprep.mubr.f32.mxu0 %v602
    %688 = vmatmul.mubr.f32.gmra.mrb[0].mxu0 %v601
    %v689 = vpop.f32.mrb[0].mxu0
    %v690 = vadd.f32 0.0, %v689
    %v691 = vpop.f32.mrb[0].mxu0
    %v692 = vadd.f32 0.0, %v691
    %693 = vmatprep.mubr.f32.mxu0 %v604
    %694 = vmatmul.mubr.f32.gmra.mrb[0].mxu0 %v603
    %v695 = vpop.f32.mrb[0].mxu0
    %v696 = vadd.f32 0.0, %v695
    %v697 = vpop.f32.mrb[0].mxu0
    %v698 = vadd.f32 0.0, %v697
    %699 = vdwg.mxu0
    %v700 = vmul.f32 %v567, %v672
    %v701 = vmul.f32 %v569, %v674
    %v702 = vmul.f32 %v573, %v678
    %v703 = vmul.f32 %v575, %v680
    %v704 = vmul.f32 %v579, %v684
    %v705 = vmul.f32 %v581, %v686
    %v706 = vmul.f32 %v585, %v690
    %v707 = vmul.f32 %v587, %v692
    %v708 = vmul.f32 %v591, %v696
    %v709 = vmul.f32 %v593, %v698
    %v710 = vadd.f32 %v700, %v702
    %v711 = vadd.f32 %v710, %v704
    %v712 = vadd.f32 %v711, %v706
    %v713 = vadd.f32 %v712, %v708
    %v714 = vrot.slane %v713, 4
    %v715 = vadd.f32 %v713, %v714
    %v716 = vrot.slane %v715, 2
    %v717 = vadd.f32 %v715, %v716
    %v718 = vrot.slane %v717, 1
    %v719 = vadd.f32 %v717, %v718
    %v720 = vadd.f32 %v701, %v703
    %v721 = vadd.f32 %v720, %v705
    %v722 = vadd.f32 %v721, %v707
    %v723 = vadd.f32 %v722, %v709
    %v724 = vrot.slane %v723, 4
    %v725 = vadd.f32 %v723, %v724
    %v726 = vrot.slane %v725, 2
    %v727 = vadd.f32 %v725, %v726
    %v728 = vrot.slane %v727, 1
    %v729 = vadd.f32 %v727, %v728
    %v732 = vcombine.low %v719, %v729
    %v734 = vunpack.c.l.s4 1966171168
    %v735 = vunpack.c.0.s8 %v734
    %v736 = vlaneseq
    %v737 = vshrl.u32 %v736, 7
    %v738 = vsub.s32 %v735, %v737
    %v739 = vrot.slane %v732, %v738
    %v741 = vunpack.c.l.s4 1966171168
    %v742 = vunpack.c.0.s8 %v741
    %v743 = vlaneseq
    %v744 = vshrl.u32 %v743, 7
    %v745 = vsub.s32 %v742, %v744
    %v746 = vrot.slane %v739, %v745
    %v748 = vlaneseq
    %vm749 = vcmp.ge.s32.totalorder %v748, 0
    %vm750 = vcmp.lt.s32.totalorder %v748, 256
    %vm751 = vmand %vm749, %vm750
    %752 = vst.msk [vmem:[#allocation8] sm:$0x3] %vm751, %v746
    // Predicated region
    $region26: #{tpu_custom_call.1} parent=1 // pred_check
      _
    $region27: #{tpu_custom_call.1} parent=1 // pred_check_branch
      %754 = sbr.rel (0) target = $region29
    $region28: #{tpu_custom_call.1} parent=1 // pred_region
      %s756 = ssub.s32 32, 32
      %757 = vsyncadd [#allocation4], %s756
      %s759 = sshll.u32 [#allocation8], 4
      %s760 = int_to_ptr.vmem [resolvable:$true] %s759
      %762 = dma.vmem_to_hbm [thread:$0]  %s760, 32, %s3, [#allocation4]
    $region29: #{tpu_custom_call.1} parent=1 // pred_fallthru
      _
    // Predicated region
    $region30: #{tpu_custom_call.1} parent=1 // pred_check
      _
    $region31: #{tpu_custom_call.1} parent=1 // pred_check_branch
      %764 = sbr.rel (0) target = $region33
    $region32: #{tpu_custom_call.1} parent=1 // pred_region
      %765 = dma.done [#allocation4], 32
    $region33: #{tpu_custom_call.1} parent=1 // pred_fallthru
      _
    %766 = vsyncpa [#allocation3], 1
    %767 = vsyncpa [#allocation6], 1
    %768 = vsyncpa [#allocation4], 1

</llo_original>
